<compile_context>
chip_gen: v7x
topology: tpu7x:2x2x1
jax: 0.10.0
libtpu: 0.0.40
codegen_flags: <defaults>
</compile_context>

<pallas_src>
import functools

import jax
import jax.numpy as jnp
from jax.experimental import pallas as pl
from jax.experimental.pallas import tpu as pltpu


# ---------------------------------------------------------------------------
# Kernel body
# ---------------------------------------------------------------------------
def _lowrank_kernel(x_ref, wd_ref, wu_ref, o_ref, *, scaling):
    # x_ref : (tm, in_dim)   row tile of the flattened input
    # wd_ref: (in_dim, k)    resident, pre-transposed down_proj weight
    # wu_ref: (k, out_dim)   resident, pre-transposed up_proj weight
    # o_ref : (tm, out_dim)
    h = jnp.dot(x_ref[...], wd_ref[...],
                preferred_element_type=jnp.float32)        # (tm, k), f32
    h = h * scaling                                        # scale the tiny rank-k slab
    o = jnp.dot(h, wu_ref[...],
                preferred_element_type=jnp.float32)        # (tm, out_dim), f32
    o_ref[...] = o.astype(o_ref.dtype)


# ---------------------------------------------------------------------------
# Sizing helpers (generation-aware, but keyed off the device kind so off-device
# tracing for a 128 MiB chip doesn't get a v7x-sized tile).
# ---------------------------------------------------------------------------
def _round_down(x, mult):
    return (x // mult) * mult


def _device_kind():
    try:
        return jax.devices()[0].device_kind.lower()
    except Exception:
        return ""


def _is_v7x():
    return "v7" in _device_kind()


def _vmem_capacity_bytes():
    try:
        return int(pltpu.get_tpu_info().vmem_capacity_bytes)
    except Exception:
        pass
    # Fallback keyed on the device kind: v7x has 64 MiB per TensorCore,
    # v5e / v6e (and unknown) have 128 MiB.
    return (64 if _is_v7x() else 128) * 1024 * 1024


_X_BUFFERS = 3  # requested pipeline depth for the x stream (budgeted for)


def _pick_tile_and_vmem(m, in_dim, out_dim, k, dtype_bytes):
    """Pick the row tile tm and the scoped VMEM limit."""
    vmem_cap = _vmem_capacity_bytes()
    vmem_limit = int(min(vmem_cap * 3 // 4, 96 * 1024 * 1024))

    # Resident weights (single-buffered via pl.Buffered(1)).
    weight_bytes = (in_dim * k + k * out_dim) * dtype_bytes

    # Per-row VMEM cost:
    #   x tile        : in_dim  * dtype_bytes, _X_BUFFERS-deep pipeline
    #   out tile      : out_dim * dtype_bytes, double-buffered
    #   f32 scratch   : h (k) + pre-cast accumulator of the 2nd dot (out_dim)
    per_row = (_X_BUFFERS * in_dim * dtype_bytes
               + 2 * out_dim * dtype_bytes
               + (k + out_dim) * 4)

    budget = max(vmem_limit - weight_bytes - (4 << 20), 1 << 20)

    # HBM roofline saturates around 512-1024 rows; bigger tiles only remove
    # pipeline steps.
    tm = max(min(budget // per_row, 1024), 8)

    if tm >= m:
        return m, vmem_limit  # one block covering every row (always legal)

    # Keep enough pipelined grid steps so input DMA of step i+1 hides behind
    # compute + writeback of step i, and both v7x TensorCores get work.
    min_steps = 8 if _is_v7x() else 4
    tm = min(tm, max(pl.cdiv(m, min_steps), 128))

    # Alignment: 256-multiples are MXU-friendly on v6e/v7x (and 128-multiples
    # for v5e); otherwise at least sublane-aligned.
    if tm >= 512:
        tm = _round_down(tm, 256)
    else:
        tm = max(_round_down(tm, 8), 8)
    return tm, vmem_limit


def _block_spec(block_shape, index_map, buffer_count=None):
    """BlockSpec with an optional explicit buffer depth.

    Falls back to the default double-buffered BlockSpec if the installed Pallas
    doesn't expose pipeline_mode / pl.Buffered.
    """
    if buffer_count is not None and hasattr(pl, "Buffered"):
        try:
            return pl.BlockSpec(block_shape, index_map,
                                pipeline_mode=pl.Buffered(buffer_count))
        except Exception:
            pass
    return pl.BlockSpec(block_shape, index_map)


# ---------------------------------------------------------------------------
# Public wrapper
# ---------------------------------------------------------------------------
def low_rank_mlp(x, w_down, w_up, *, alpha=1):
    """Forward pass of LowRankMLP: (x @ w_down.T @ w_up.T) * (alpha / k).

    x:      (..., in_dim)
    w_down: (k, in_dim)   -- nn.Linear(in_dim, k).weight
    w_up:   (out_dim, k)  -- nn.Linear(k, out_dim).weight
    """
    k, in_dim = w_down.shape
    out_dim, k2 = w_up.shape
    assert k2 == k, "w_up inner dim must match w_down rank"
    scaling = float(alpha) / float(k)

    lead_shape = x.shape[:-1]
    m = 1
    for d in lead_shape:
        m *= d
    x2d = x.reshape(m, in_dim)

    # One-time transposes of the tiny low-rank weights so the kernel body uses
    # plain (M,K)x(K,N) dots (no per-step XLU transpose of resident tiles).
    wd_t = jnp.transpose(w_down)   # (in_dim, k)
    wu_t = jnp.transpose(w_up)     # (k, out_dim)

    dtype_bytes = jnp.dtype(x.dtype).itemsize
    tm, vmem_limit = _pick_tile_and_vmem(m, in_dim, out_dim, k, dtype_bytes)

    grid_len = pl.cdiv(m, tm)            # trailing partial block is masked by Pallas
    x_buffers = _X_BUFFERS if grid_len >= 3 else None

    out2d = pl.pallas_call(
        functools.partial(_lowrank_kernel, scaling=scaling),
        out_shape=jax.ShapeDtypeStruct((m, out_dim), x.dtype),
        grid_spec=pltpu.PrefetchScalarGridSpec(
            num_scalar_prefetch=0,
            grid=(grid_len,),
            in_specs=[
                _block_spec((tm, in_dim), lambda i: (i, 0),
                            buffer_count=x_buffers),          # streamed activations
                _block_spec((in_dim, k), lambda i: (0, 0),
                            buffer_count=1),                  # resident weight
                _block_spec((k, out_dim), lambda i: (0, 0),
                            buffer_count=1),                  # resident weight
            ],
            out_specs=pl.BlockSpec((tm, out_dim), lambda i: (i, 0)),
        ),
        compiler_params=pltpu.CompilerParams(
            dimension_semantics=("parallel",),
            vmem_limit_bytes=vmem_limit,
        ),
    )(x2d, wd_t, wu_t)

    return out2d.reshape(*lead_shape, out_dim)


# ---------------------------------------------------------------------------
# Reference + self-test
# ---------------------------------------------------------------------------
def reference(x, w_down, w_up, alpha, k):
    scaling = alpha / k
    return (x @ w_down.T @ w_up.T) * scaling


if __name__ == "__main__":
    # Small shapes consistent with the module: seq=8, batch=2, in_dim=32,
    # out_dim=32, low rank k=4, alpha=1 (bias1=bias2=False as in the defaults).
    seq, batch, in_dim, out_dim, k, alpha = 8, 2, 32, 32, 4, 1

    key = jax.random.PRNGKey(0)
    kx, kd, ku = jax.random.split(key, 3)

    x = jax.random.normal(kx, (seq, batch, in_dim), dtype=jnp.float32)
    # Deterministic synthetic parameter init (uniform, like nn.Linear's default
    # kaiming_uniform range ~ 1/sqrt(fan_in)).
    w_down = jax.random.uniform(
        kd, (k, in_dim), dtype=jnp.float32,
        minval=-1.0 / jnp.sqrt(in_dim), maxval=1.0 / jnp.sqrt(in_dim))
    w_up = jax.random.uniform(
        ku, (out_dim, k), dtype=jnp.float32,
        minval=-1.0 / jnp.sqrt(k), maxval=1.0 / jnp.sqrt(k))

    out = low_rank_mlp(x, w_down, w_up, alpha=alpha)
    out = jax.block_until_ready(out)

    ref = reference(x, w_down, w_up, alpha, k)
    assert out.shape == ref.shape == (seq, batch, out_dim)
    assert jnp.allclose(out, ref, atol=1e-5, rtol=1e-5)

    print("KERNEL_OK")
</pallas_src>

<mosaic_0001>
module attributes {stable_mosaic.version = 11 : i64} {
  func.func @_lowrank_kernel(%arg0: i32, %arg1: memref<16x32xf32, #tpu.memory_space<vmem>>, %arg2: memref<32x4xf32, #tpu.memory_space<vmem>>, %arg3: memref<4x32xf32, #tpu.memory_space<vmem>>, %arg4: memref<16x32xf32, #tpu.memory_space<vmem>>) attributes {dimension_semantics = [#tpu.dimension_semantics<parallel>], iteration_bounds = array<i64: 1>, scalar_prefetch = 0 : i64, scratch_operands = 0 : i64, tpu.core_type = #tpu.core_type<tc>, window_params = [{transform_indices = @transform_0, window_bounds = array<i64: 16, 32>}, {pipeline_mode = #tpu.pipeline_mode<synchronous>, transform_indices = @transform_1, window_bounds = array<i64: 32, 4>}, {pipeline_mode = #tpu.pipeline_mode<synchronous>, transform_indices = @transform_2, window_bounds = array<i64: 4, 32>}, {transform_indices = @transform_3, window_bounds = array<i64: 16, 32>}]} {
    %c0 = arith.constant 0 : index
    %c0_0 = arith.constant 0 : index
    %0 = vector.load %arg1[%c0, %c0_0] : memref<16x32xf32, #tpu.memory_space<vmem>>, vector<16x32xf32>
    %c0_1 = arith.constant 0 : index
    %c0_2 = arith.constant 0 : index
    %1 = vector.load %arg2[%c0_1, %c0_2] : memref<32x4xf32, #tpu.memory_space<vmem>>, vector<32x4xf32>
    %cst = arith.constant dense<0.000000e+00> : vector<16x4xf32>
    %2 = tpu.matmul %0, %1, %cst {dimension_numbers = #tpu.dot_dimension_numbers<[1], [0], [0], [1], [0, 0, 1, 1], [], []>} : vector<16x32xf32>, vector<32x4xf32>, vector<16x4xf32> -> vector<16x4xf32>
    %cst_3 = arith.constant 2.500000e-01 : f32
    %3 = vector.broadcast %cst_3 : f32 to vector<16x4xf32>
    %4 = arith.mulf %2, %3 : vector<16x4xf32>
    %c0_4 = arith.constant 0 : index
    %c0_5 = arith.constant 0 : index
    %5 = vector.load %arg3[%c0_4, %c0_5] : memref<4x32xf32, #tpu.memory_space<vmem>>, vector<4x32xf32>
    %cst_6 = arith.constant dense<0.000000e+00> : vector<16x32xf32>
    %6 = tpu.matmul %4, %5, %cst_6 {dimension_numbers = #tpu.dot_dimension_numbers<[1], [0], [0], [1], [0, 0, 1, 1], [], []>} : vector<16x4xf32>, vector<4x32xf32>, vector<16x32xf32> -> vector<16x32xf32>
    %c0_7 = arith.constant 0 : index
    %c0_8 = arith.constant 0 : index
    %7 = vector.load %arg4[%c0_7, %c0_8] : memref<16x32xf32, #tpu.memory_space<vmem>>, vector<16x32xf32>
    tpu.vector_store %arg4[%c0_7, %c0_8], %6 {strides = array<i32>} : memref<16x32xf32, #tpu.memory_space<vmem>>, vector<16x32xf32>,
    return
  }
  func.func @transform_0(%arg0: i32) -> (i32, i32) {
    %c0_i32 = arith.constant 0 : i32
    %c0_i32_0 = arith.constant 0 : i32
    return %arg0, %c0_i32 : i32, i32
  }
  func.func @transform_1(%arg0: i32) -> (i32, i32) {
    %c0_i32 = arith.constant 0 : i32
    %c0_i32_0 = arith.constant 0 : i32
    %c0_i32_1 = arith.constant 0 : i32
    return %c0_i32, %c0_i32_0 : i32, i32
  }
  func.func @transform_2(%arg0: i32) -> (i32, i32) {
    %c0_i32 = arith.constant 0 : i32
    %c0_i32_0 = arith.constant 0 : i32
    %c0_i32_1 = arith.constant 0 : i32
    return %c0_i32, %c0_i32_0 : i32, i32
  }
  func.func @transform_3(%arg0: i32) -> (i32, i32) {
    %c0_i32 = arith.constant 0 : i32
    %c0_i32_0 = arith.constant 0 : i32
    return %arg0, %c0_i32 : i32, i32
  }
}

</mosaic_0001>

<llo_original>
// kernel: tpu_custom_call.1
$region0: #{tpu_custom_call.1}
  #allocation0 [shape = 'u32[]', space=smem, size = 0x4, offset = 0x4, fixed_abs, tag = 'smem constant byte address 0x4 - core index']
  #allocation1 [shape = 'u32[144,128]{1,0:T(1,128)}', space=vmem, size = 0x12000, scoped, tag = 'internal scratch']
  %s0 = inlined_call_operand.hbm [shape: f32[16,32], index: 0, kind: input, shape index: {}]
  %s1 = inlined_call_operand.hbm [shape: f32[32,4], index: 1, kind: input, shape index: {}]
  %s2 = inlined_call_operand.hbm [shape: f32[4,32], index: 2, kind: input, shape index: {}]
  %s3 = inlined_call_operand.hbm [shape: f32[16,32], index: 3, kind: output, shape index: {}]
  %s4 = sld [smem:[#allocation0]]
  $region34: #{tpu_custom_call.1} parent=0
    _
  %s6 = ssub.s32 1, %s4
  %s7 = scalar_select 0, %s6, %s4
  $region1: #{tpu_custom_call.1} parent=0
    #allocation2 [shape = 'u8[8192]{0}', space=vmem, size = 0x2000, scoped, tag = 'input window, operand 0, single buffered']
    #allocation3 [shape = 's32[1]{0}', space=sflag, size = 0x4, scoped, tag = 'scoped memory for tpu_custom_call.1']
    #allocation4 [shape = 's32[1]{0}', space=sflag, size = 0x4, scoped, tag = 'scoped memory for tpu_custom_call.1']
    #allocation5 [shape = 'u8[16384]{0}', space=vmem, size = 0x4000, scoped, tag = 'input window, operand 1, single buffered']
    #allocation6 [shape = 's32[1]{0}', space=sflag, size = 0x4, scoped, tag = 'scoped memory for tpu_custom_call.1']
    #allocation7 [shape = 'u8[2048]{0}', space=vmem, size = 0x800, scoped, tag = 'input window, operand 2, single buffered']
    #allocation8 [shape = 'u8[8192]{0}', space=vmem, size = 0x2000, scoped, tag = 'output window, operand 0, single buffered']
    %8 = vsyncpa [#allocation3], 0
    %9 = vsyncpa [#allocation6], 0
    %10 = vsyncpa [#allocation4], 0
    // Predicated region
    $region2: #{tpu_custom_call.1} parent=1 // pred_check
      _
    $region3: #{tpu_custom_call.1} parent=1 // pred_check_branch
      %12 = sbr.rel (0) target = $region5
    $region4: #{tpu_custom_call.1} parent=1 // pred_region
      %s14 = ssub.s32 256, 256
      %15 = vsyncadd [#allocation3], %s14
      %s16 = sshll.u32 [#allocation2], 4
      %s17 = int_to_ptr.vmem [resolvable:$true] %s16
      %22 = dma.hbm_to_vmem [thread:$0]  %s0, 256, %s17, [#allocation3], 128, 128, 8
    $region5: #{tpu_custom_call.1} parent=1 // pred_fallthru
      _
    // Predicated region
    $region6: #{tpu_custom_call.1} parent=1 // pred_check
      _
    $region7: #{tpu_custom_call.1} parent=1 // pred_check_branch
      %24 = sbr.rel (0) target = $region9
    $region8: #{tpu_custom_call.1} parent=1 // pred_region
      %s26 = ssub.s32 512, 512
      %27 = vsyncadd [#allocation6], %s26
      %s28 = sshll.u32 [#allocation5], 4
      %s29 = int_to_ptr.vmem [resolvable:$true] %s28
      %34 = dma.hbm_to_vmem [thread:$0]  %s1, 512, %s29, [#allocation6], 128, 128, 8
    $region9: #{tpu_custom_call.1} parent=1 // pred_fallthru
      _
    // Predicated region
    $region10: #{tpu_custom_call.1} parent=1 // pred_check
      _
    $region11: #{tpu_custom_call.1} parent=1 // pred_check_branch
      %36 = sbr.rel (0) target = $region13
    $region12: #{tpu_custom_call.1} parent=1 // pred_region
      %s38 = ssub.s32 64, 64
      %39 = vsyncadd [#allocation6], %s38
      %s41 = sshll.u32 [#allocation7], 4
      %s42 = int_to_ptr.vmem [resolvable:$true] %s41
      %44 = dma.hbm_to_vmem [thread:$0]  %s2, 64, %s42, [#allocation6]
    $region13: #{tpu_custom_call.1} parent=1 // pred_fallthru
      _
    // Predicated region
    $region14: #{tpu_custom_call.1} parent=1 // pred_check
      _
    $region15: #{tpu_custom_call.1} parent=1 // pred_check_branch
      %46 = sbr.rel (0) target = $region17
    $region16: #{tpu_custom_call.1} parent=1 // pred_region
      %47 = dma.done [#allocation3], 256
    $region17: #{tpu_custom_call.1} parent=1 // pred_fallthru
      _
    // Predicated region
    $region18: #{tpu_custom_call.1} parent=1 // pred_check
      _
    $region19: #{tpu_custom_call.1} parent=1 // pred_check_branch
      %49 = sbr.rel (0) target = $region21
    $region20: #{tpu_custom_call.1} parent=1 // pred_region
      %50 = dma.done [#allocation6], 512
    $region21: #{tpu_custom_call.1} parent=1 // pred_fallthru
      _
    // Predicated region
    $region22: #{tpu_custom_call.1} parent=1 // pred_check
      _
    $region23: #{tpu_custom_call.1} parent=1 // pred_check_branch
      %52 = sbr.rel (0) target = $region25
    $region24: #{tpu_custom_call.1} parent=1 // pred_region
      %53 = dma.done [#allocation6], 64
    $region25: #{tpu_custom_call.1} parent=1 // pred_fallthru
      _
    %v54 = vld [vmem:[#allocation2] sm:$0xff]
    %v55 = vld [vmem:[#allocation2 + $0x8] sm:$0xff]
    %v56 = vld [vmem:[#allocation5] sm:$0xff]
    %v57 = vld [vmem:[#allocation5 + $0x8] sm:$0xff]
    %v58 = vld [vmem:[#allocation5 + $0x10] sm:$0xff]
    %v59 = vld [vmem:[#allocation5 + $0x18] sm:$0xff]
    %vm60 = vcmask 261120
    %v62 = vsel %vm60, %v54, 0
    %v65 = vsel %vm60, %v55, 0
    %67 = vmatprep.subr.mxu0 0.0
    %68 = vmatpush1.msra.mxu0 %v56
    %69 = vmatprep.subr.mxu0 0.0
    %70 = vmatpush1.msra.mxu0 %v57
    %71 = vmatprep.subr.mxu0 0.0
    %72 = vmatpush1.msra.mxu0 %v58
    %73 = vmatprep.subr.mxu0 0.0
    %74 = vmatpush1.msra.mxu0 %v59
    %75 = vmatprep.subr.mxu0 0.0
    %76 = vmatpush1.msra.mxu0 0.0
    %77 = vmatprep.subr.mxu0 0.0
    %78 = vmatpush1.msra.mxu0 0.0
    %79 = vmatprep.subr.mxu0 0.0
    %80 = vmatpush1.msra.mxu0 0.0
    %81 = vmatprep.subr.mxu0 0.0
    %82 = vmatpush1.msra.mxu0 0.0
    %83 = vmatprep.subr.mxu0 0.0
    %84 = vmatpush1.msra.mxu0 0.0
    %85 = vmatprep.subr.mxu0 0.0
    %86 = vmatpush1.msra.mxu0 0.0
    %87 = vmatprep.subr.mxu0 0.0
    %88 = vmatpush1.msra.mxu0 0.0
    %89 = vmatprep.subr.mxu0 0.0
    %90 = vmatpush1.msra.mxu0 0.0
    %91 = vmatprep.subr.mxu0 0.0
    %92 = vmatpush1.msra.mxu0 0.0
    %93 = vmatprep.subr.mxu0 0.0
    %94 = vmatpush1.msra.mxu0 0.0
    %95 = vmatprep.subr.mxu0 0.0
    %96 = vmatpush1.msra.mxu0 0.0
    %97 = vmatprep.subr.mxu0 0.0
    %98 = vmatpush1.msra.mxu0 0.0
    %99 = vmatprep.subr.mxu0 0.0
    %100 = vmatpush1.msra.mxu0 0.0
    %101 = vmatprep.subr.mxu0 0.0
    %102 = vmatpush1.msra.mxu0 0.0
    %103 = vmatprep.subr.mxu0 0.0
    %104 = vmatpush1.msra.mxu0 0.0
    %105 = vmatprep.subr.mxu0 0.0
    %106 = vmatpush1.msra.mxu0 0.0
    %107 = vmatprep.subr.mxu0 0.0
    %108 = vmatpush1.msra.mxu0 0.0
    %109 = vmatprep.subr.mxu0 0.0
    %110 = vmatpush1.msra.mxu0 0.0
    %111 = vmatprep.subr.mxu0 0.0
    %112 = vmatpush1.msra.mxu0 0.0
    %113 = vmatprep.subr.mxu0 0.0
    %114 = vmatpush1.msra.mxu0 0.0
    %115 = vmatprep.subr.mxu0 0.0
    %116 = vmatpush1.msra.mxu0 0.0
    %117 = vmatprep.subr.mxu0 0.0
    %118 = vmatpush1.msra.mxu0 0.0
    %119 = vmatprep.subr.mxu0 0.0
    %120 = vmatpush1.msra.mxu0 0.0
    %121 = vmatprep.subr.mxu0 0.0
    %122 = vmatpush1.msra.mxu0 0.0
    %123 = vmatprep.subr.mxu0 0.0
    %124 = vmatpush1.msra.mxu0 0.0
    %125 = vmatprep.subr.mxu0 0.0
    %126 = vmatpush1.msra.mxu0 0.0
    %127 = vmatprep.subr.mxu0 0.0
    %128 = vmatpush1.msra.mxu0 0.0
    %129 = vmatprep.subr.mxu0 0.0
    %130 = vmatpush1.msra.mxu0 0.0
    %131 = vmatprep.mubr.f32.mxu0 0.0
    %132 = vmatmul.mubr.f32.gmra.mrb[0].mxu0 %v62
    %v133 = vpop.f32.mrb[0].mxu0
    %v134 = vadd.f32 0.0, %v133
    %v135 = vpop.f32.mrb[0].mxu0
    %136 = vmatprep.mubr.f32.mxu0 0.0
    %137 = vmatmul.mubr.f32.gmra.mrb[0].mxu0 %v65
    %v138 = vpop.f32.mrb[0].mxu0
    %v139 = vadd.f32 0.0, %v138
    %v140 = vpop.f32.mrb[0].mxu0
    %141 = vdwg.mxu0
    %v142 = vmul.f32 %v134, 0.25
    %v143 = vmul.f32 %v139, 0.25
    %v144 = vld [vmem:[#allocation7] sm:$0xf]
    %vm145 = vcmask 31744
    %v147 = vsel %vm145, %v142, 0
    %v150 = vsel %vm145, %v143, 0
    %vm152 = vcmask 1043456
    %v154 = vsel %vm152, %v144, 0
    %156 = vmatprep.subr.mxu0 0.0
    %157 = vmatpush1.msra.mxu0 %v154
    %158 = vmatprep.subr.mxu0 0.0
    %159 = vmatpush1.msra.mxu0 0.0
    %160 = vmatprep.subr.mxu0 0.0
    %161 = vmatpush1.msra.mxu0 0.0
    %162 = vmatprep.subr.mxu0 0.0
    %163 = vmatpush1.msra.mxu0 0.0
    %164 = vmatprep.subr.mxu0 0.0
    %165 = vmatpush1.msra.mxu0 0.0
    %166 = vmatprep.subr.mxu0 0.0
    %167 = vmatpush1.msra.mxu0 0.0
    %168 = vmatprep.subr.mxu0 0.0
    %169 = vmatpush1.msra.mxu0 0.0
    %170 = vmatprep.subr.mxu0 0.0
    %171 = vmatpush1.msra.mxu0 0.0
    %172 = vmatprep.subr.mxu0 0.0
    %173 = vmatpush1.msra.mxu0 0.0
    %174 = vmatprep.subr.mxu0 0.0
    %175 = vmatpush1.msra.mxu0 0.0
    %176 = vmatprep.subr.mxu0 0.0
    %177 = vmatpush1.msra.mxu0 0.0
    %178 = vmatprep.subr.mxu0 0.0
    %179 = vmatpush1.msra.mxu0 0.0
    %180 = vmatprep.subr.mxu0 0.0
    %181 = vmatpush1.msra.mxu0 0.0
    %182 = vmatprep.subr.mxu0 0.0
    %183 = vmatpush1.msra.mxu0 0.0
    %184 = vmatprep.subr.mxu0 0.0
    %185 = vmatpush1.msra.mxu0 0.0
    %186 = vmatprep.subr.mxu0 0.0
    %187 = vmatpush1.msra.mxu0 0.0
    %188 = vmatprep.subr.mxu0 0.0
    %189 = vmatpush1.msra.mxu0 0.0
    %190 = vmatprep.subr.mxu0 0.0
    %191 = vmatpush1.msra.mxu0 0.0
    %192 = vmatprep.subr.mxu0 0.0
    %193 = vmatpush1.msra.mxu0 0.0
    %194 = vmatprep.subr.mxu0 0.0
    %195 = vmatpush1.msra.mxu0 0.0
    %196 = vmatprep.subr.mxu0 0.0
    %197 = vmatpush1.msra.mxu0 0.0
    %198 = vmatprep.subr.mxu0 0.0
    %199 = vmatpush1.msra.mxu0 0.0
    %200 = vmatprep.subr.mxu0 0.0
    %201 = vmatpush1.msra.mxu0 0.0
    %202 = vmatprep.subr.mxu0 0.0
    %203 = vmatpush1.msra.mxu0 0.0
    %204 = vmatprep.subr.mxu0 0.0
    %205 = vmatpush1.msra.mxu0 0.0
    %206 = vmatprep.subr.mxu0 0.0
    %207 = vmatpush1.msra.mxu0 0.0
    %208 = vmatprep.subr.mxu0 0.0
    %209 = vmatpush1.msra.mxu0 0.0
    %210 = vmatprep.subr.mxu0 0.0
    %211 = vmatpush1.msra.mxu0 0.0
    %212 = vmatprep.subr.mxu0 0.0
    %213 = vmatpush1.msra.mxu0 0.0
    %214 = vmatprep.subr.mxu0 0.0
    %215 = vmatpush1.msra.mxu0 0.0
    %216 = vmatprep.subr.mxu0 0.0
    %217 = vmatpush1.msra.mxu0 0.0
    %218 = vmatprep.subr.mxu0 0.0
    %219 = vmatpush1.msra.mxu0 0.0
    %220 = vmatprep.mubr.f32.mxu0 0.0
    %221 = vmatmul.mubr.f32.gmra.mrb[0].mxu0 %v147
    %v222 = vpop.f32.mrb[0].mxu0
    %v223 = vadd.f32 0.0, %v222
    %v224 = vpop.f32.mrb[0].mxu0
    %225 = vmatprep.mubr.f32.mxu0 0.0
    %226 = vmatmul.mubr.f32.gmra.mrb[0].mxu0 %v150
    %v227 = vpop.f32.mrb[0].mxu0
    %v228 = vadd.f32 0.0, %v227
    %v229 = vpop.f32.mrb[0].mxu0
    %230 = vdwg.mxu0
    %231 = vst.msk [vmem:[#allocation8] sm:$0xff] %vm60, %v223
    %232 = vst.msk [vmem:[#allocation8 + $0x8] sm:$0xff] %vm60, %v228
    // Predicated region
    $region26: #{tpu_custom_call.1} parent=1 // pred_check
      _
    $region27: #{tpu_custom_call.1} parent=1 // pred_check_branch
      %234 = sbr.rel (0) target = $region29
    $region28: #{tpu_custom_call.1} parent=1 // pred_region
      %s236 = ssub.s32 256, 256
      %237 = vsyncadd [#allocation4], %s236
      %s238 = sshll.u32 [#allocation8], 4
      %s239 = int_to_ptr.vmem [resolvable:$true] %s238
      %244 = dma.vmem_to_hbm [thread:$0]  %s239, 256, %s3, [#allocation4], 128, 128, 8
    $region29: #{tpu_custom_call.1} parent=1 // pred_fallthru
      _
    // Predicated region
    $region30: #{tpu_custom_call.1} parent=1 // pred_check
      _
    $region31: #{tpu_custom_call.1} parent=1 // pred_check_branch
      %246 = sbr.rel (0) target = $region33
    $region32: #{tpu_custom_call.1} parent=1 // pred_region
      %247 = dma.done [#allocation4], 256
    $region33: #{tpu_custom_call.1} parent=1 // pred_fallthru
      _
    %248 = vsyncpa [#allocation3], 1
    %249 = vsyncpa [#allocation6], 1
    %250 = vsyncpa [#allocation4], 1

</llo_original>
